<compile_context>
chip_gen: v5e
topology: v5e:2x2
jax: 0.10.0
libtpu: 0.0.40
codegen_flags: <defaults>
</compile_context>

<pallas_src>
import functools

import jax
import jax.numpy as jnp
import numpy as np
from jax import lax
from jax.experimental import pallas as pl
from jax.experimental.pallas import tpu as pltpu

LANE = 128
SUBLANE = 8
_LOG2 = float(np.log(2.0))
_EPS = 1e-12


def _round_up(x, m):
    return (x + m - 1) // m * m


def _logcosh_kernel(*refs, mode, block_rows, inner_steps, n_valid, needs_mask):
    if mode == "none":
        yt_ref, yp_ref, out_ref = refs
        w_ref = None
    else:
        yt_ref, yp_ref, w_ref, out_ref = refs

    c = pl.program_id(0)  # parallel chunk (sharded across TCs on v7x)
    s = pl.program_id(1)  # sequential reduction step within the chunk

    @pl.when(s == 0)
    def _():
        out_ref[...] = jnp.zeros_like(out_ref)

    ey = yt_ref[...].astype(jnp.float32) - yp_ref[...].astype(jnp.float32)
    if mode == "full":
        ey = ey * w_ref[...].astype(jnp.float32)
    elif mode == "scalar":
        ey = ey * w_ref[0]

    # Numerically stable log(cosh(x)) = |x| + log1p(exp(-2|x|)) - log(2).
    ax = jnp.abs(ey + _EPS)
    val = ax + jnp.log1p(jnp.exp(-2.0 * ax)) - _LOG2

    if needs_mask:
        blk = c * inner_steps + s  # un-clamped logical block index
        grow = blk * block_rows + lax.broadcasted_iota(
            jnp.int32, (block_rows, LANE), 0)
        gcol = lax.broadcasted_iota(jnp.int32, (block_rows, LANE), 1)
        full_rows = n_valid // LANE
        tail = n_valid % LANE
        mask = grow < full_rows
        if tail:
            mask = mask | ((grow == full_rows) & (gcol < tail))
        val = jnp.where(mask, val, 0.0)

    # vreg-aligned accumulate: fold (block_rows, 128) into the resident
    # (1, 8, 128) output block (writeback only when the chunk changes).
    out_ref[0] += val.reshape(block_rows // SUBLANE, SUBLANE, LANE).sum(axis=0)


def log_cosh_loss(y_t, y_prime_t, weights=None, reduction=None,
                  block_rows=2048, num_chunks=2):
    """Pallas TPU implementation of LogCoshLoss.forward."""
    y_t = jnp.asarray(y_t)
    y_prime_t = jnp.asarray(y_prime_t)
    shape = jnp.broadcast_shapes(y_t.shape, y_prime_t.shape)
    y_t = jnp.broadcast_to(y_t, shape)
    y_prime_t = jnp.broadcast_to(y_prime_t, shape)
    if not jnp.issubdtype(y_t.dtype, jnp.floating):
        y_t = y_t.astype(jnp.float32)
    if not jnp.issubdtype(y_prime_t.dtype, jnp.floating):
        y_prime_t = y_prime_t.astype(jnp.float32)

    n = int(np.prod(shape)) if shape else 1
    padded = _round_up(n, SUBLANE * LANE)
    rows = padded // LANE

    def to_slab(x):
        flat = x.reshape(-1)
        if padded != n:
            # TODO(synk): a fully pad-free ragged tail would need manual DMA;
            # the pad (<= 1023 elems worth) is skipped whenever n is aligned.
            flat = jnp.pad(flat, (0, padded - n))
        return flat.reshape(rows, LANE)

    # Weights path: none / scalar (SMEM) / full tensor stream.
    if weights is None:
        mode = "none"
    else:
        weights = jnp.asarray(weights)
        mode = "scalar" if weights.size == 1 else "full"

    block_rows = min(_round_up(max(int(block_rows), SUBLANE), SUBLANE), rows)
    total_blocks = pl.cdiv(rows, block_rows)
    num_chunks = max(1, min(int(num_chunks), total_blocks))
    inner_steps = pl.cdiv(total_blocks, num_chunks)
    covered = num_chunks * inner_steps * block_rows * LANE
    needs_mask = covered != n

    def block_map(c, s):
        idx = c * inner_steps + s
        return (jnp.minimum(idx, total_blocks - 1), 0)

    data_spec = pl.BlockSpec((block_rows, LANE), block_map)

    operands = [to_slab(y_t), to_slab(y_prime_t)]
    in_specs = [data_spec, data_spec]
    if mode == "full":
        w = jnp.broadcast_to(weights, shape)
        if not jnp.issubdtype(w.dtype, jnp.floating):
            w = w.astype(jnp.float32)
        operands.append(to_slab(w))
        in_specs.append(data_spec)
    elif mode == "scalar":
        operands.append(weights.astype(jnp.float32).reshape(1))
        in_specs.append(pl.BlockSpec(memory_space=pltpu.MemorySpace.SMEM))

    kernel = functools.partial(
        _logcosh_kernel, mode=mode, block_rows=block_rows,
        inner_steps=inner_steps, n_valid=n, needs_mask=needs_mask)

    partials = pl.pallas_call(
        kernel,
        out_shape=jax.ShapeDtypeStruct((num_chunks, SUBLANE, LANE), jnp.float32),
        grid_spec=pltpu.PrefetchScalarGridSpec(
            num_scalar_prefetch=0,
            grid=(num_chunks, inner_steps),
            in_specs=in_specs,
            out_specs=pl.BlockSpec((1, SUBLANE, LANE), lambda c, s: (c, 0, 0)),
        ),
        compiler_params=pltpu.CompilerParams(
            dimension_semantics=("parallel", "arbitrary")),
    )(*operands)

    total = jnp.sum(partials, dtype=jnp.float32)
    if reduction == "sum":
        return total
    return total / jnp.float32(n)  # torch default: mean for anything != 'sum'


if __name__ == "__main__":
    key = jax.random.PRNGKey(0)
    k1, k2, k3 = jax.random.split(key, 3)

    shape = (2, 4, 16, 16)
    y_t = jax.random.normal(k1, shape, dtype=jnp.float32)
    y_p = jax.random.normal(k2, shape, dtype=jnp.float32)
    w = jax.random.uniform(k3, shape, dtype=jnp.float32)

    def ref_loss(a, b, wt=None, reduction=None):
        ey = a - b
        if wt is not None:
            ey = ey * wt
        v = jnp.log(jnp.cosh(ey + 1e-12))
        return jnp.sum(v) if reduction == "sum" else jnp.mean(v)

    checks = []
    # mean, no weights (single-block fast path)
    checks.append((log_cosh_loss(y_t, y_p), ref_loss(y_t, y_p)))
    # sum, full weight tensor
    checks.append((log_cosh_loss(y_t, y_p, weights=w, reduction="sum"),
                   ref_loss(y_t, y_p, w, "sum")))
    # scalar weight (SMEM path)
    checks.append((log_cosh_loss(y_t, y_p, weights=jnp.float32(0.5)),
                   ref_loss(y_t, y_p, 0.5)))
    # 2 parallel chunks (v7x-style split), small blocks
    checks.append((log_cosh_loss(y_t, y_p, block_rows=8, num_chunks=2),
                   ref_loss(y_t, y_p)))
    # multi-step inner reduction with full weights
    checks.append((log_cosh_loss(y_t, y_p, weights=w, reduction="sum",
                                 block_rows=8, num_chunks=1),
                   ref_loss(y_t, y_p, w, "sum")))
    # ragged size -> in-kernel masking path
    y_t2 = jax.random.normal(k1, (3, 5, 7), dtype=jnp.float32)
    y_p2 = jax.random.normal(k2, (3, 5, 7), dtype=jnp.float32)
    checks.append((log_cosh_loss(y_t2, y_p2, reduction="sum"),
                   ref_loss(y_t2, y_p2, None, "sum")))
    # bf16 inputs stream as bf16, upcast in-register
    checks.append((log_cosh_loss(y_t.astype(jnp.bfloat16),
                                 y_p.astype(jnp.bfloat16)),
                   ref_loss(y_t.astype(jnp.bfloat16).astype(jnp.float32),
                            y_p.astype(jnp.bfloat16).astype(jnp.float32))))

    for got, want in checks:
        got = jax.block_until_ready(got)
        assert np.isclose(float(got), float(want), rtol=1e-5, atol=1e-6), (
            float(got), float(want))

    print("KERNEL_OK")
</pallas_src>

<mosaic_0001>
module attributes {stable_mosaic.version = 11 : i64} {
  func.func @_logcosh_kernel(%arg0: i32, %arg1: i32, %arg2: memref<16x128xf32, #tpu.memory_space<vmem>>, %arg3: memref<16x128xf32, #tpu.memory_space<vmem>>, %arg4: memref<1x8x128xf32, #tpu.memory_space<vmem>>) attributes {dimension_semantics = [#tpu.dimension_semantics<parallel>, #tpu.dimension_semantics<arbitrary>], iteration_bounds = array<i64: 1, 1>, scalar_prefetch = 0 : i64, scratch_operands = 0 : i64, tpu.core_type = #tpu.core_type<tc>, window_params = [{transform_indices = @transform_0, window_bounds = array<i64: 16, 128>}, {transform_indices = @transform_1, window_bounds = array<i64: 16, 128>}, {transform_indices = @transform_2, window_bounds = array<i64: 1, 8, 128>}]} {
    %c0_i32 = arith.constant 0 : i32
    %0 = arith.cmpi eq, %arg1, %c0_i32 : i32
    %1 = arith.extui %0 : i1 to i32
    %c0_i32_0 = arith.constant 0 : i32
    %2 = arith.cmpi ne, %1, %c0_i32_0 : i32
    scf.if %2 {
      %cst_13 = arith.constant 0.000000e+00 : f32
      %24 = vector.broadcast %cst_13 : f32 to vector<1x8x128xf32>
      %c0_14 = arith.constant 0 : index
      %c0_15 = arith.constant 0 : index
      %c0_16 = arith.constant 0 : index
      %25 = vector.load %arg4[%c0_14, %c0_15, %c0_16] : memref<1x8x128xf32, #tpu.memory_space<vmem>>, vector<1x8x128xf32>
      tpu.vector_store %arg4[%c0_14, %c0_15, %c0_16], %24 {strides = array<i32>} : memref<1x8x128xf32, #tpu.memory_space<vmem>>, vector<1x8x128xf32>,
    } else {
    }
    %c0 = arith.constant 0 : index
    %c0_1 = arith.constant 0 : index
    %3 = vector.load %arg2[%c0, %c0_1] : memref<16x128xf32, #tpu.memory_space<vmem>>, vector<16x128xf32>
    %c0_2 = arith.constant 0 : index
    %c0_3 = arith.constant 0 : index
    %4 = vector.load %arg3[%c0_2, %c0_3] : memref<16x128xf32, #tpu.memory_space<vmem>>, vector<16x128xf32>
    %5 = arith.subf %3, %4 : vector<16x128xf32>
    %cst = arith.constant 9.99999996E-13 : f32
    %6 = vector.broadcast %cst : f32 to vector<16x128xf32>
    %7 = arith.addf %5, %6 : vector<16x128xf32>
    %8 = math.absf %7 : vector<16x128xf32>
    %cst_4 = arith.constant -2.000000e+00 : f32
    %9 = vector.broadcast %cst_4 : f32 to vector<16x128xf32>
    %10 = arith.mulf %9, %8 : vector<16x128xf32>
    %11 = math.exp %10 : vector<16x128xf32>
    %12 = math.log1p %11 : vector<16x128xf32>
    %13 = arith.addf %8, %12 : vector<16x128xf32>
    %cst_5 = arith.constant 0.693147182 : f32
    %14 = vector.broadcast %cst_5 : f32 to vector<16x128xf32>
    %15 = arith.subf %13, %14 : vector<16x128xf32>
    %c0_6 = arith.constant 0 : index
    %c0_7 = arith.constant 0 : index
    %c0_8 = arith.constant 0 : index
    %16 = vector.load %arg4[%c0_6, %c0_7, %c0_8] : memref<1x8x128xf32, #tpu.memory_space<vmem>>, vector<1x8x128xf32>
    %17 = vector.shape_cast %16 : vector<1x8x128xf32> to vector<8x128xf32>
    %18 = vector.shape_cast %15 : vector<16x128xf32> to vector<2x8x128xf32>
    %cst_9 = arith.constant dense<0.000000e+00> : vector<8x128xf32>
    %19 = vector.multi_reduction <add>, %18, %cst_9 [0] : vector<2x8x128xf32> to vector<8x128xf32>
    %20 = arith.addf %17, %19 : vector<8x128xf32>
    %c0_10 = arith.constant 0 : index
    %c0_11 = arith.constant 0 : index
    %c0_12 = arith.constant 0 : index
    %21 = vector.load %arg4[%c0_10, %c0_11, %c0_12] : memref<1x8x128xf32, #tpu.memory_space<vmem>>, vector<1x8x128xf32>
    %22 = vector.shape_cast %21 : vector<1x8x128xf32> to vector<8x128xf32>
    %23 = vector.shape_cast %20 : vector<8x128xf32> to vector<1x8x128xf32>
    tpu.vector_store %arg4[%c0_10, %c0_11, %c0_12], %23 {strides = array<i32>} : memref<1x8x128xf32, #tpu.memory_space<vmem>>, vector<1x8x128xf32>,
    return
  }
  func.func @transform_0(%arg0: i32, %arg1: i32) -> (i32, i32) {
    %c1_i32 = arith.constant 1 : i32
    %0 = arith.muli %arg0, %c1_i32 : i32
    %1 = arith.addi %0, %arg1 : i32
    %c0_i32 = arith.constant 0 : i32
    %2 = arith.minsi %1, %c0_i32 : i32
    %c0_i32_0 = arith.constant 0 : i32
    %c0_i32_1 = arith.constant 0 : i32
    return %2, %c0_i32_0 : i32, i32
  }
  func.func @transform_1(%arg0: i32, %arg1: i32) -> (i32, i32) {
    %c1_i32 = arith.constant 1 : i32
    %0 = arith.muli %arg0, %c1_i32 : i32
    %1 = arith.addi %0, %arg1 : i32
    %c0_i32 = arith.constant 0 : i32
    %2 = arith.minsi %1, %c0_i32 : i32
    %c0_i32_0 = arith.constant 0 : i32
    %c0_i32_1 = arith.constant 0 : i32
    return %2, %c0_i32_0 : i32, i32
  }
  func.func @transform_2(%arg0: i32, %arg1: i32) -> (i32, i32, i32) {
    %c0_i32 = arith.constant 0 : i32
    %c0_i32_0 = arith.constant 0 : i32
    %c0_i32_1 = arith.constant 0 : i32
    return %arg0, %c0_i32, %c0_i32_0 : i32, i32, i32
  }
}

</mosaic_0001>

<llo_original>
// kernel: tpu_custom_call.1
$region0: #{tpu_custom_call.1}
  #allocation0 [shape = 'u32[]', space=smem, size = 0x4, offset = 0x4, fixed_abs, tag = 'smem constant byte address 0x4 - core index']
  #allocation1 [shape = 'u32[72,128]{1,0:T(1,128)}', space=vmem, size = 0x9000, scoped, tag = 'internal scratch']
  %s0 = inlined_call_operand.hbm [shape: f32[16,128], index: 0, kind: input, shape index: {}]
  %s1 = inlined_call_operand.hbm [shape: f32[16,128], index: 1, kind: input, shape index: {}]
  %s2 = inlined_call_operand.hbm [shape: f32[1,8,128], index: 2, kind: output, shape index: {}]
  %s3 = sld [smem:[#allocation0]]
  $region30: #{tpu_custom_call.1} parent=0
    _
  %s5 = ssub.s32 1, %s3
  %s6 = scalar_select 0, %s5, %s3
  $region1: #{tpu_custom_call.1} parent=0
    #allocation2 [shape = 'u8[8192]{0}', space=vmem, size = 0x2000, scoped, tag = 'input window, operand 0, single buffered']
    #allocation3 [shape = 's32[1]{0}', space=sflag, size = 0x4, scoped, tag = 'scoped memory for tpu_custom_call.1']
    #allocation4 [shape = 's32[1]{0}', space=sflag, size = 0x4, scoped, tag = 'scoped memory for tpu_custom_call.1']
    #allocation5 [shape = 'u8[8192]{0}', space=vmem, size = 0x2000, scoped, tag = 'input window, operand 1, single buffered']
    #allocation6 [shape = 's32[1]{0}', space=sflag, size = 0x4, scoped, tag = 'scoped memory for tpu_custom_call.1']
    #allocation7 [shape = 'u8[4096]{0}', space=vmem, size = 0x1000, scoped, tag = 'output window, operand 0, single buffered']
    %7 = vsyncpa [#allocation3], 0
    %8 = vsyncpa [#allocation6], 0
    %9 = vsyncpa [#allocation4], 0
    // Predicated region
    $region2: #{tpu_custom_call.1} parent=1 // pred_check
      _
    $region3: #{tpu_custom_call.1} parent=1 // pred_check_branch
      %11 = sbr.rel (0) target = $region5
    $region4: #{tpu_custom_call.1} parent=1 // pred_region
      %s12 = sadd.s32 0, 0
      %p13 = scmp.lt.s32.totalorder %s12, 0
      %s14 = scalar_select %p13, %s12, 0
      %s15 = smul.u32 2, %s14
      %17 = vsyncadd [#allocation3], 0
      %s18 = smul.addr %s15, 8
      %s19 = scalar_lea.hbm %s0, %s18
      %s20 = sshll.u32 %s19, 4
      %s21 = int_to_ptr.hbm [resolvable:$true] %s20
      %s22 = sshll.u32 [#allocation2], 4
      %s23 = int_to_ptr.vmem [resolvable:$true] %s22
      %28 = dma.hbm_to_vmem [thread:$0]  %s21, 256, %s23, [#allocation3], 128, 128, 8
    $region5: #{tpu_custom_call.1} parent=1 // pred_fallthru
      _
    // Predicated region
    $region6: #{tpu_custom_call.1} parent=1 // pred_check
      _
    $region7: #{tpu_custom_call.1} parent=1 // pred_check_branch
      %30 = sbr.rel (0) target = $region9
    $region8: #{tpu_custom_call.1} parent=1 // pred_region
      %s31 = sadd.s32 0, 0
      %p32 = scmp.lt.s32.totalorder %s31, 0
      %s33 = scalar_select %p32, %s31, 0
      %s34 = smul.u32 2, %s33
      %36 = vsyncadd [#allocation6], 0
      %s37 = smul.addr %s34, 8
      %s38 = scalar_lea.hbm %s1, %s37
      %s39 = sshll.u32 %s38, 4
      %s40 = int_to_ptr.hbm [resolvable:$true] %s39
      %s41 = sshll.u32 [#allocation5], 4
      %s42 = int_to_ptr.vmem [resolvable:$true] %s41
      %47 = dma.hbm_to_vmem [thread:$0]  %s40, 256, %s42, [#allocation6], 128, 128, 8
    $region9: #{tpu_custom_call.1} parent=1 // pred_fallthru
      _
    // Predicated region
    $region10: #{tpu_custom_call.1} parent=1 // pred_check
      _
    $region11: #{tpu_custom_call.1} parent=1 // pred_check_branch
      %49 = sbr.rel (0) target = $region13
    $region12: #{tpu_custom_call.1} parent=1 // pred_region
      %51 = dma.done [#allocation3], 256
    $region13: #{tpu_custom_call.1} parent=1 // pred_fallthru
      _
    // Predicated region
    $region14: #{tpu_custom_call.1} parent=1 // pred_check
      _
    $region15: #{tpu_custom_call.1} parent=1 // pred_check_branch
      %53 = sbr.rel (0) target = $region17
    $region16: #{tpu_custom_call.1} parent=1 // pred_region
      %55 = dma.done [#allocation6], 256
    $region17: #{tpu_custom_call.1} parent=1 // pred_fallthru
      _
    %s56 = sadd.s32 0, 0
    %p57 = scmp.lt.s32.totalorder %s56, 0
    %s58 = scalar_select %p57, %s56, 0
    %s59 = smul.u32 2, %s58
    %s60 = sadd.s32 0, 0
    %p61 = scmp.lt.s32.totalorder %s60, 0
    %s62 = scalar_select %p61, %s60, 0
    %s63 = smul.u32 2, %s62
    %p64 = scmp.eq.s32.totalorder 0, 0
    // Predicated region
    $region18: #{tpu_custom_call.1} parent=1 // pred_check
      %p65 = pneg %p64
    $region19: #{tpu_custom_call.1} parent=1 // pred_check_branch
      %67 = sbr.rel (%p65) target = $region21
    $region20: #{tpu_custom_call.1} parent=1 // pred_region
      %68 = vst [vmem:[#allocation7] sm:$0xff] 0.0
    $region21: #{tpu_custom_call.1} parent=1 // pred_fallthru
      _
    %v69 = vld [vmem:[#allocation2] sm:$0xff]
    %v70 = vld [vmem:[#allocation2 + $0x8] sm:$0xff]
    %v71 = vld [vmem:[#allocation5] sm:$0xff]
    %v72 = vld [vmem:[#allocation5 + $0x8] sm:$0xff]
    %v73 = vsub.f32 %v69, %v71
    %v74 = vsub.f32 %v70, %v72
    %v75 = vadd.f32 %v73, 1e-12
    %v76 = vadd.f32 %v74, 1e-12
    %v77 = vand.u32 2147483647, %v75
    %v78 = vand.u32 2147483647, %v76
    %v79 = vmul.f32 %v77, -2.0
    %v80 = vmul.f32 %v78, -2.0
    %v81 = vmul.f32 %v79, 1.442695
    %v82 = vpow.pop %v81
    %v83 = vmul.f32 %v80, 1.442695
    %v84 = vpow.pop %v83
    %v85 = vadd.f32 %v82, 1.0
    %v86 = vlog2.pop %v85
    %v87 = vmul.f32 %v86, 0.6931472
    %v88 = vmul.f32 -0.5, %v82
    %v89 = vadd.f32 %v88, 1.0
    %v90 = vmul.f32 %v89, %v82
    %v91 = vand.u32 2147483647, %v82
    %vm92 = vcmp.lt.f32.partialorder %v91, 0.0004427343
    %v93 = vsel %vm92, %v90, %v87
    %v94 = vadd.f32 %v84, 1.0
    %v95 = vlog2.pop %v94
    %v96 = vmul.f32 %v95, 0.6931472
    %v97 = vmul.f32 -0.5, %v84
    %v98 = vadd.f32 %v97, 1.0
    %v99 = vmul.f32 %v98, %v84
    %v100 = vand.u32 2147483647, %v84
    %vm101 = vcmp.lt.f32.partialorder %v100, 0.0004427343
    %v102 = vsel %vm101, %v99, %v96
    %v103 = vadd.f32 %v77, %v93
    %v104 = vadd.f32 %v78, %v102
    %v105 = vsub.f32 %v103, 0.6931472
    %v106 = vsub.f32 %v104, 0.6931472
    %v107 = vld [vmem:[#allocation7] sm:$0xff]
    %v108 = vadd.f32 %v105, %v106
    %v109 = vadd.f32 %v107, %v108
    %110 = vst [vmem:[#allocation7] sm:$0xff] %v109
    // Predicated region
    $region22: #{tpu_custom_call.1} parent=1 // pred_check
      _
    $region23: #{tpu_custom_call.1} parent=1 // pred_check_branch
      %112 = sbr.rel (0) target = $region25
    $region24: #{tpu_custom_call.1} parent=1 // pred_region
      %114 = vsyncadd [#allocation4], 0
      %s116 = sshll.u32 [#allocation7], 4
      %s117 = int_to_ptr.vmem [resolvable:$true] %s116
      %s118 = sshll.u32 %s2, 4
      %s119 = int_to_ptr.hbm [resolvable:$true] %s118
      %121 = dma.vmem_to_hbm [thread:$0]  %s117, 128, %s119, [#allocation4]
    $region25: #{tpu_custom_call.1} parent=1 // pred_fallthru
      _
    // Predicated region
    $region26: #{tpu_custom_call.1} parent=1 // pred_check
      _
    $region27: #{tpu_custom_call.1} parent=1 // pred_check_branch
      %123 = sbr.rel (0) target = $region29
    $region28: #{tpu_custom_call.1} parent=1 // pred_region
      %125 = dma.done [#allocation4], 128
    $region29: #{tpu_custom_call.1} parent=1 // pred_fallthru
      _
    %126 = vsyncpa [#allocation3], 1
    %127 = vsyncpa [#allocation6], 1
    %128 = vsyncpa [#allocation4], 1

</llo_original>
